<compile_context>
chip_gen: v7x
topology: tpu7x:2x2x1
jax: 0.10.0
libtpu: 0.0.40
codegen_flags: <defaults>
</compile_context>

<pallas_src>
import functools

import jax
import jax.numpy as jnp
from jax import lax
from jax.experimental import pallas as pl
from jax.experimental.pallas import tpu as pltpu


def _sum_fusion_kernel(skip_ref, x_ref, ss_s_ref, ss_x_ref, w_s_ref, w_x_ref,
                       o_ref):
    # skip_ref: (Nb, C_skip, HW)   Nb batch elements; channels on sublanes,
    # x_ref:    (Nb, C_in,  HW)    flattened spatial on the lane axis.
    # ss_*_ref: (C, 2)             column 0 = BN scale, column 1 = BN shift.
    # w_*_ref:  (C_out, C)         1x1 conv weights (OI), f32.
    # o_ref:    (Nb, C_out, HW)    lane-dense output (HW multiple of 128).
    nb, c_skip, hw = skip_ref.shape
    c_in = x_ref.shape[1]

    # Hoist parameter loads and their lane-broadcasts out of the batch loop
    # (JAX does not CSE broadcast_in_dim inside loops).
    scale_s = jnp.broadcast_to(ss_s_ref[:, 0:1], (c_skip, hw))
    shift_s = jnp.broadcast_to(ss_s_ref[:, 1:2], (c_skip, hw))
    scale_x = jnp.broadcast_to(ss_x_ref[:, 0:1], (c_in, hw))
    shift_x = jnp.broadcast_to(ss_x_ref[:, 1:2], (c_in, hw))
    w_s = w_s_ref[...]
    w_x = w_x_ref[...]

    def body(n, carry):
        # Fused inference BatchNorm (folded affine) + ReLU on the VPU, in f32
        # (v5e has no bf16 VALU; for f32 callers the astype is a no-op).
        a_s = jnp.maximum(
            skip_ref[n].astype(jnp.float32) * scale_s + shift_s, 0.0)
        a_x = jnp.maximum(
            x_ref[n].astype(jnp.float32) * scale_x + shift_x, 0.0)

        # 1x1 conv == channel matmul on the MXU; the SumFusion "+" is fused
        # into the f32 accumulator.  Two tiny dots (K=6 and K=4) — MXU work is
        # negligible here, the kernel is HBM/step-overhead bound.
        out = jnp.dot(w_s, a_s, preferred_element_type=jnp.float32)
        out = out + jnp.dot(w_x, a_x, preferred_element_type=jnp.float32)
        o_ref[n] = out.astype(o_ref.dtype)
        return carry

    # fori_loop (not an unrolled Python loop) bounds live ranges so Nb up to
    # the cap below never spills vregs.
    lax.fori_loop(0, nb, body, 0)


def sum_fusion_2d(x_nchw, skip_nchw,
                  w1_oihw, gamma1, beta1, mean1, var1,
                  w2_oihw, gamma2, beta2, mean2, var2,
                  *, eps=1e-5):
    """SumFusion2d forward: conv1(BN->ReLU->1x1)(skipx) + conv2(...)(x), NCHW."""
    N, C_in, H, W = x_nchw.shape
    Ns, C_skip, Hs, Ws = skip_nchw.shape
    assert (N, H, W) == (Ns, Hs, Ws)
    C_out = w1_oihw.shape[0]
    assert w1_oihw.shape == (C_out, C_skip, 1, 1)
    assert w2_oihw.shape == (C_out, C_in, 1, 1)
    HW = H * W

    out_dtype = jnp.result_type(x_nchw.dtype, skip_nchw.dtype)

    # Fold eval-mode BatchNorm into per-channel [scale, shift] columns (f32).
    def fold(gamma, beta, mean, var):
        scale = (gamma.astype(jnp.float32)
                 / jnp.sqrt(var.astype(jnp.float32) + eps))
        shift = beta.astype(jnp.float32) - mean.astype(jnp.float32) * scale
        return jnp.stack([scale, shift], axis=1)          # (C, 2)

    ss_s = fold(gamma1, beta1, mean1, var1)               # skip branch (conv1)
    ss_x = fold(gamma2, beta2, mean2, var2)               # x branch    (conv2)

    w_s = w1_oihw.reshape(C_out, C_skip).astype(jnp.float32)
    w_x = w2_oihw.reshape(C_out, C_in).astype(jnp.float32)

    # NCHW -> (N, C, H*W) is a pure reshape — no transpose, no dtype cast, so
    # HBM traffic stays in the caller's dtype.
    x_flat = x_nchw.reshape(N, C_in, HW)
    skip_flat = skip_nchw.reshape(N, C_skip, HW)

    # --- Pick Nb (images per grid step) -------------------------------------
    # Target ~1 MiB of activation+output traffic per step so the ~0.35us/step
    # overhead is amortized, but:
    #   * keep grid >= 2 when N >= 2 so both v7x TensorCores get work,
    #   * hard-cap at 32 so double-buffered tiles stay well under the scoped
    #     VMEM defaults on every generation (v5e 16 MiB, v6e 32 MiB, v7x 32 of
    #     64 MiB) without needing vmem_limit_bytes.
    itemsize = jnp.dtype(out_dtype).itemsize
    bytes_per_img = (C_skip + C_in + C_out) * HW * itemsize
    nb = max(1, min(N, 32, (1 << 20) // max(bytes_per_img, 1)))
    if N >= 2:
        nb = min(nb, max(1, N // 2))
    grid = pl.cdiv(N, nb)

    out_flat = pl.pallas_call(
        _sum_fusion_kernel,
        out_shape=jax.ShapeDtypeStruct((N, C_out, HW), out_dtype),
        grid_spec=pltpu.PrefetchScalarGridSpec(
            num_scalar_prefetch=0,
            grid=(grid,),
            in_specs=[
                pl.BlockSpec((nb, C_skip, HW), lambda n: (n, 0, 0)),
                pl.BlockSpec((nb, C_in, HW), lambda n: (n, 0, 0)),
                # Grid-invariant parameter blocks: constant index_map means
                # they are DMA'd once and kept resident across grid steps.
                pl.BlockSpec((C_skip, 2), lambda n: (0, 0)),
                pl.BlockSpec((C_in, 2), lambda n: (0, 0)),
                pl.BlockSpec((C_out, C_skip), lambda n: (0, 0)),
                pl.BlockSpec((C_out, C_in), lambda n: (0, 0)),
            ],
            out_specs=pl.BlockSpec((nb, C_out, HW), lambda n: (n, 0, 0)),
        ),
        compiler_params=pltpu.CompilerParams(
            dimension_semantics=("parallel",)),
    )(skip_flat, x_flat, ss_s, ss_x, w_s, w_x)

    # Only a reshape back to NCHW — no transpose needed.
    return out_flat.reshape(N, C_out, H, W)


def sum_fusion_2d_ref(x, skipx,
                      w1, gamma1, beta1, mean1, var1,
                      w2, gamma2, beta2, mean2, var2, *, eps=1e-5):
    """Pure-JAX reference with the same eval-mode BN semantics."""
    def bnnla(a, gamma, beta, mean, var, w):
        scale = gamma / jnp.sqrt(var + eps)
        shift = beta - mean * scale
        a = jnp.maximum(
            a * scale[None, :, None, None] + shift[None, :, None, None], 0.0)
        return lax.conv_general_dilated(
            a, w, window_strides=(1, 1), padding=[(0, 0), (0, 0)],
            dimension_numbers=("NCHW", "OIHW", "NCHW"),
            precision=lax.Precision.HIGHEST)

    return (bnnla(skipx, gamma1, beta1, mean1, var1, w1)
            + bnnla(x, gamma2, beta2, mean2, var2, w2))


if __name__ == "__main__":
    key = jax.random.PRNGKey(0)
    keys = jax.random.split(key, 12)

    # SumFusion2d(inChans=4, skipChans=6, outChans=8) on 2x16x16 feature maps.
    N, H, W = 2, 16, 16
    C_in, C_skip, C_out = 4, 6, 8

    x = jax.random.normal(keys[0], (N, C_in, H, W), dtype=jnp.float32)
    skipx = jax.random.normal(keys[1], (N, C_skip, H, W), dtype=jnp.float32)

    # conv1 = BNNLAConv(skipChans -> outChans, k=1, s=1, p=0)
    w1 = 0.1 * jax.random.normal(keys[2], (C_out, C_skip, 1, 1), jnp.float32)
    gamma1 = 1.0 + 0.1 * jax.random.normal(keys[3], (C_skip,), jnp.float32)
    beta1 = 0.1 * jax.random.normal(keys[4], (C_skip,), jnp.float32)
    mean1 = 0.1 * jax.random.normal(keys[5], (C_skip,), jnp.float32)
    var1 = jnp.abs(jax.random.normal(keys[6], (C_skip,), jnp.float32)) + 0.5

    # conv2 = BNNLAConv(inChans -> outChans, k=1, s=1, p=0)
    w2 = 0.1 * jax.random.normal(keys[7], (C_out, C_in, 1, 1), jnp.float32)
    gamma2 = 1.0 + 0.1 * jax.random.normal(keys[8], (C_in,), jnp.float32)
    beta2 = 0.1 * jax.random.normal(keys[9], (C_in,), jnp.float32)
    mean2 = 0.1 * jax.random.normal(keys[10], (C_in,), jnp.float32)
    var2 = jnp.abs(jax.random.normal(keys[11], (C_in,), jnp.float32)) + 0.5

    out = sum_fusion_2d(x, skipx,
                        w1, gamma1, beta1, mean1, var1,
                        w2, gamma2, beta2, mean2, var2)
    out = jax.block_until_ready(out)

    ref = sum_fusion_2d_ref(x, skipx,
                            w1, gamma1, beta1, mean1, var1,
                            w2, gamma2, beta2, mean2, var2)
    assert out.shape == (N, C_out, H, W), out.shape
    max_err = float(jnp.max(jnp.abs(out - ref)))
    # Documented tolerance: kernel dots use default MXU precision while the
    # reference uses Precision.HIGHEST; at K <= 10 the gap is << 5e-3.
    assert jnp.allclose(out, ref, rtol=5e-3, atol=5e-3), max_err

    print("KERNEL_OK")
</pallas_src>

<mosaic_0001>
module attributes {stable_mosaic.version = 11 : i64} {
  func.func @_sum_fusion_kernel(%arg0: i32, %arg1: memref<1x6x256xf32, #tpu.memory_space<vmem>>, %arg2: memref<1x4x256xf32, #tpu.memory_space<vmem>>, %arg3: memref<6x2xf32, #tpu.memory_space<vmem>>, %arg4: memref<4x2xf32, #tpu.memory_space<vmem>>, %arg5: memref<8x6xf32, #tpu.memory_space<vmem>>, %arg6: memref<8x4xf32, #tpu.memory_space<vmem>>, %arg7: memref<1x8x256xf32, #tpu.memory_space<vmem>>) attributes {dimension_semantics = [#tpu.dimension_semantics<parallel>], iteration_bounds = array<i64: 2>, scalar_prefetch = 0 : i64, scratch_operands = 0 : i64, tpu.core_type = #tpu.core_type<tc>, window_params = [{transform_indices = @transform_0, window_bounds = array<i64: 1, 6, 256>}, {transform_indices = @transform_1, window_bounds = array<i64: 1, 4, 256>}, {pipeline_mode = #tpu.pipeline_mode<synchronous>, transform_indices = @transform_2, window_bounds = array<i64: 6, 2>}, {pipeline_mode = #tpu.pipeline_mode<synchronous>, transform_indices = @transform_3, window_bounds = array<i64: 4, 2>}, {pipeline_mode = #tpu.pipeline_mode<synchronous>, transform_indices = @transform_4, window_bounds = array<i64: 8, 6>}, {pipeline_mode = #tpu.pipeline_mode<synchronous>, transform_indices = @transform_5, window_bounds = array<i64: 8, 4>}, {transform_indices = @transform_6, window_bounds = array<i64: 1, 8, 256>}]} {
    %c0 = arith.constant 0 : index
    %c0_0 = arith.constant 0 : index
    %0 = vector.load %arg3[%c0, %c0_0] : memref<6x2xf32, #tpu.memory_space<vmem>>, vector<6x1xf32>
    %1 = vector.shape_cast %0 : vector<6x1xf32> to vector<6x1xf32>
    %2 = vector.broadcast %1 : vector<6x1xf32> to vector<6x256xf32>
    %c0_1 = arith.constant 0 : index
    %c1 = arith.constant 1 : index
    %3 = vector.load %arg3[%c0_1, %c1] : memref<6x2xf32, #tpu.memory_space<vmem>>, vector<6x1xf32>
    %4 = vector.shape_cast %3 : vector<6x1xf32> to vector<6x1xf32>
    %5 = vector.broadcast %4 : vector<6x1xf32> to vector<6x256xf32>
    %c0_2 = arith.constant 0 : index
    %c0_3 = arith.constant 0 : index
    %6 = vector.load %arg4[%c0_2, %c0_3] : memref<4x2xf32, #tpu.memory_space<vmem>>, vector<4x1xf32>
    %7 = vector.shape_cast %6 : vector<4x1xf32> to vector<4x1xf32>
    %8 = vector.broadcast %7 : vector<4x1xf32> to vector<4x256xf32>
    %c0_4 = arith.constant 0 : index
    %c1_5 = arith.constant 1 : index
    %9 = vector.load %arg4[%c0_4, %c1_5] : memref<4x2xf32, #tpu.memory_space<vmem>>, vector<4x1xf32>
    %10 = vector.shape_cast %9 : vector<4x1xf32> to vector<4x1xf32>
    %11 = vector.broadcast %10 : vector<4x1xf32> to vector<4x256xf32>
    %c0_6 = arith.constant 0 : index
    %c0_7 = arith.constant 0 : index
    %12 = vector.load %arg5[%c0_6, %c0_7] : memref<8x6xf32, #tpu.memory_space<vmem>>, vector<8x6xf32>
    %c0_8 = arith.constant 0 : index
    %c0_9 = arith.constant 0 : index
    %13 = vector.load %arg6[%c0_8, %c0_9] : memref<8x4xf32, #tpu.memory_space<vmem>>, vector<8x4xf32>
    %c0_i32 = arith.constant 0 : i32
    %14 = arith.index_cast %c0_i32 : i32 to index
    %c0_10 = arith.constant 0 : index
    %c0_11 = arith.constant 0 : index
    %15 = vector.load %arg1[%14, %c0_10, %c0_11] : memref<1x6x256xf32, #tpu.memory_space<vmem>>, vector<1x6x256xf32>
    %16 = vector.shape_cast %15 : vector<1x6x256xf32> to vector<6x256xf32>
    %17 = arith.mulf %16, %2 : vector<6x256xf32>
    %18 = arith.addf %17, %5 : vector<6x256xf32>
    %cst = arith.constant 0.000000e+00 : f32
    %19 = vector.broadcast %cst : f32 to vector<6x256xf32>
    %20 = arith.maximumf %18, %19 : vector<6x256xf32>
    %21 = arith.index_cast %c0_i32 : i32 to index
    %c0_12 = arith.constant 0 : index
    %c0_13 = arith.constant 0 : index
    %22 = vector.load %arg2[%21, %c0_12, %c0_13] : memref<1x4x256xf32, #tpu.memory_space<vmem>>, vector<1x4x256xf32>
    %23 = vector.shape_cast %22 : vector<1x4x256xf32> to vector<4x256xf32>
    %24 = arith.mulf %23, %8 : vector<4x256xf32>
    %25 = arith.addf %24, %11 : vector<4x256xf32>
    %cst_14 = arith.constant 0.000000e+00 : f32
    %26 = vector.broadcast %cst_14 : f32 to vector<4x256xf32>
    %27 = arith.maximumf %25, %26 : vector<4x256xf32>
    %cst_15 = arith.constant dense<0.000000e+00> : vector<8x256xf32>
    %28 = tpu.matmul %12, %20, %cst_15 {dimension_numbers = #tpu.dot_dimension_numbers<[1], [0], [0], [1], [0, 0, 1, 1], [], []>} : vector<8x6xf32>, vector<6x256xf32>, vector<8x256xf32> -> vector<8x256xf32>
    %cst_16 = arith.constant dense<0.000000e+00> : vector<8x256xf32>
    %29 = tpu.matmul %13, %27, %cst_16 {dimension_numbers = #tpu.dot_dimension_numbers<[1], [0], [0], [1], [0, 0, 1, 1], [], []>} : vector<8x4xf32>, vector<4x256xf32>, vector<8x256xf32> -> vector<8x256xf32>
    %30 = arith.addf %28, %29 : vector<8x256xf32>
    %31 = arith.index_cast %c0_i32 : i32 to index
    %c0_17 = arith.constant 0 : index
    %c0_18 = arith.constant 0 : index
    %32 = vector.load %arg7[%31, %c0_17, %c0_18] : memref<1x8x256xf32, #tpu.memory_space<vmem>>, vector<1x8x256xf32>
    %33 = vector.shape_cast %32 : vector<1x8x256xf32> to vector<8x256xf32>
    %34 = vector.shape_cast %30 : vector<8x256xf32> to vector<1x8x256xf32>
    tpu.vector_store %arg7[%31, %c0_17, %c0_18], %34 {strides = array<i32>} : memref<1x8x256xf32, #tpu.memory_space<vmem>>, vector<1x8x256xf32>,
    %c1_i32 = arith.constant 1 : i32
    return
  }
  func.func @transform_0(%arg0: i32) -> (i32, i32, i32) {
    %c0_i32 = arith.constant 0 : i32
    %c0_i32_0 = arith.constant 0 : i32
    %c0_i32_1 = arith.constant 0 : i32
    return %arg0, %c0_i32, %c0_i32_0 : i32, i32, i32
  }
  func.func @transform_1(%arg0: i32) -> (i32, i32, i32) {
    %c0_i32 = arith.constant 0 : i32
    %c0_i32_0 = arith.constant 0 : i32
    %c0_i32_1 = arith.constant 0 : i32
    return %arg0, %c0_i32, %c0_i32_0 : i32, i32, i32
  }
  func.func @transform_2(%arg0: i32) -> (i32, i32) {
    %c0_i32 = arith.constant 0 : i32
    %c0_i32_0 = arith.constant 0 : i32
    %c0_i32_1 = arith.constant 0 : i32
    return %c0_i32, %c0_i32_0 : i32, i32
  }
  func.func @transform_3(%arg0: i32) -> (i32, i32) {
    %c0_i32 = arith.constant 0 : i32
    %c0_i32_0 = arith.constant 0 : i32
    %c0_i32_1 = arith.constant 0 : i32
    return %c0_i32, %c0_i32_0 : i32, i32
  }
  func.func @transform_4(%arg0: i32) -> (i32, i32) {
    %c0_i32 = arith.constant 0 : i32
    %c0_i32_0 = arith.constant 0 : i32
    %c0_i32_1 = arith.constant 0 : i32
    return %c0_i32, %c0_i32_0 : i32, i32
  }
  func.func @transform_5(%arg0: i32) -> (i32, i32) {
    %c0_i32 = arith.constant 0 : i32
    %c0_i32_0 = arith.constant 0 : i32
    %c0_i32_1 = arith.constant 0 : i32
    return %c0_i32, %c0_i32_0 : i32, i32
  }
  func.func @transform_6(%arg0: i32) -> (i32, i32, i32) {
    %c0_i32 = arith.constant 0 : i32
    %c0_i32_0 = arith.constant 0 : i32
    %c0_i32_1 = arith.constant 0 : i32
    return %arg0, %c0_i32, %c0_i32_0 : i32, i32, i32
  }
}

</mosaic_0001>

<llo_original>
// kernel: tpu_custom_call.1
$region0: #{tpu_custom_call.1}
  #allocation0 [shape = 'u32[]', space=smem, size = 0x4, offset = 0x4, fixed_abs, tag = 'smem constant byte address 0x4 - core index']
  #allocation1 [shape = 'u32[144,128]{1,0:T(1,128)}', space=vmem, size = 0x12000, scoped, tag = 'internal scratch']
  %s0 = inlined_call_operand.vmem [shape: f32[2,6,256], index: 0, kind: input, shape index: {}]
  %s1 = inlined_call_operand.vmem [shape: f32[2,4,256], index: 1, kind: input, shape index: {}]
  %s2 = inlined_call_operand.vmem [shape: f32[6,2], index: 2, kind: input, shape index: {}]
  %s3 = inlined_call_operand.vmem [shape: f32[4,2], index: 3, kind: input, shape index: {}]
  %s4 = inlined_call_operand.vmem [shape: f32[8,6], index: 4, kind: input, shape index: {}]
  %s5 = inlined_call_operand.vmem [shape: f32[8,4], index: 5, kind: input, shape index: {}]
  %s6 = inlined_call_operand.hbm [shape: f32[2,8,256], index: 6, kind: output, shape index: {}]
  %s7 = sld [smem:[#allocation0]]
  $region57: #{tpu_custom_call.1} parent=0
    _
  %s9 = ssub.s32 1, %s7
  %s10 = scalar_select 0, %s9, %s7
  $region1: #{tpu_custom_call.1} parent=0
    #allocation2 [shape = 'u8[16384]{0}', space=vmem, size = 0x4000, scoped, tag = 'output window, operand 0']
    #allocation3 [shape = 's32[2]{0}', space=sflag, size = 0x8, scoped, tag = 'scoped memory for tpu_custom_call.1']
    %11 = vsyncpa [#allocation3], 0
    %s12 = scalar_lea.sflag [#allocation3], 1
    %13 = vsyncpa %s12, 0
    loop: start=0, step=1, limit=4
    $region2: #{tpu_custom_call.1} parent=1 // loop_pre_header
      _
    $region3: #{tpu_custom_call.1} parent=1 // loop_header
      %s15 = sphi 0, %s19
      %p16 = scmp.ge.s32.totalorder %s15, 4
      %s25 = sphi 0, %s27
      %s28 = sphi 0, %s25
      %s29 = sphi 0, %s28
      %s45 = sphi 0, %s29
      %s51 = sphi 0, %s53
      %s54 = sphi 0, %s51
      %s55 = sphi 0, %s54
      %s71 = sphi 0, %s55
      %s75 = sphi 0, %s75
      %s77 = sphi 0, %s75
      %s78 = sphi 0, %s77
      %s92 = sphi 0, %s78
      %s96 = sphi 0, %s96
      %s98 = sphi 0, %s96
      %s99 = sphi 0, %s98
      %s113 = sphi 0, %s99
      %s117 = sphi 0, %s117
      %s119 = sphi 0, %s117
      %s120 = sphi 0, %s119
      %s134 = sphi 0, %s120
      %s138 = sphi 0, %s138
      %s140 = sphi 0, %s138
      %s141 = sphi 0, %s140
      %s155 = sphi 0, %s141
      %s161 = sphi 0, %s163
      %s164 = sphi 0, %s161
      %s165 = sphi 0, %s164
      %s181 = sphi 0, %s165
    $region4: #{tpu_custom_call.1} parent=1 // loop_header_branch
      %18 = sbr.rel (%p16) target = $region8
    $region5: #{tpu_custom_call.1} parent=1 // loop_body
      %s20 = ssub.s32 %s15, 1
      %s21 = ssub.s32 %s15, 2
      %s22 = sadd.s32 %s15, 1
      %s23 = ssub.s32 %s15, %s22
      %p24 = scmp.eq.s32.totalorder %s23, 0
      %s26 = sadd.s32 %s25, 1
      %s27 = scalar_select %p24, %s25, %s26
      %p30 = pneg %p24
      %p31 = scmp.eq.s32.totalorder %s15, 1
      %p32 = por %p30, %p31
      %p33 = scmp.ne.s32.totalorder %s25, %s28
      %p34 = scmp.eq.s32.totalorder %s15, 0
      %p35 = por %p33, %p34
      %p36 = scmp.ne.s32.totalorder %s25, %s28
      %p37 = scmp.eq.s32.totalorder %s20, 1
      %p38 = por %p36, %p37
      %p39 = scmp.ne.s32.totalorder %s28, %s29
      %p40 = scmp.eq.s32.totalorder %s20, 0
      %p41 = por %p39, %p40
      %p42 = scmp.ne.s32.totalorder %s28, %s29
      %p43 = scmp.eq.s32.totalorder %s21, 1
      %p44 = por %p42, %p43
      %p46 = scmp.ne.s32.totalorder %s29, %s45
      %p47 = scmp.eq.s32.totalorder %s21, 0
      %p48 = por %p46, %p47
      %s49 = ssub.s32 %s15, %s22
      %p50 = scmp.eq.s32.totalorder %s49, 0
      %s52 = sadd.s32 %s51, 1
      %s53 = scalar_select %p50, %s51, %s52
      %p56 = pneg %p50
      %p57 = scmp.eq.s32.totalorder %s15, 1
      %p58 = por %p56, %p57
      %p59 = scmp.ne.s32.totalorder %s51, %s54
      %p60 = scmp.eq.s32.totalorder %s15, 0
      %p61 = por %p59, %p60
      %p62 = scmp.ne.s32.totalorder %s51, %s54
      %p63 = scmp.eq.s32.totalorder %s20, 1
      %p64 = por %p62, %p63
      %p65 = scmp.ne.s32.totalorder %s54, %s55
      %p66 = scmp.eq.s32.totalorder %s20, 0
      %p67 = por %p65, %p66
      %p68 = scmp.ne.s32.totalorder %s54, %s55
      %p69 = scmp.eq.s32.totalorder %s21, 1
      %p70 = por %p68, %p69
      %p72 = scmp.ne.s32.totalorder %s55, %s71
      %p73 = scmp.eq.s32.totalorder %s21, 0
      %p74 = por %p72, %p73
      %s76 = sadd.s32 %s75, 1
      %p79 = scmp.eq.s32.totalorder %s15, 1
      %p80 = scmp.ne.s32.totalorder %s75, %s77
      %p81 = scmp.eq.s32.totalorder %s15, 0
      %p82 = por %p80, %p81
      %p83 = scmp.ne.s32.totalorder %s75, %s77
      %p84 = scmp.eq.s32.totalorder %s20, 1
      %p85 = por %p83, %p84
      %p86 = scmp.ne.s32.totalorder %s77, %s78
      %p87 = scmp.eq.s32.totalorder %s20, 0
      %p88 = por %p86, %p87
      %p89 = scmp.ne.s32.totalorder %s77, %s78
      %p90 = scmp.eq.s32.totalorder %s21, 1
      %p91 = por %p89, %p90
      %p93 = scmp.ne.s32.totalorder %s78, %s92
      %p94 = scmp.eq.s32.totalorder %s21, 0
      %p95 = por %p93, %p94
      %s97 = sadd.s32 %s96, 1
      %p100 = scmp.eq.s32.totalorder %s15, 1
      %p101 = scmp.ne.s32.totalorder %s96, %s98
      %p102 = scmp.eq.s32.totalorder %s15, 0
      %p103 = por %p101, %p102
      %p104 = scmp.ne.s32.totalorder %s96, %s98
      %p105 = scmp.eq.s32.totalorder %s20, 1
      %p106 = por %p104, %p105
      %p107 = scmp.ne.s32.totalorder %s98, %s99
      %p108 = scmp.eq.s32.totalorder %s20, 0
      %p109 = por %p107, %p108
      %p110 = scmp.ne.s32.totalorder %s98, %s99
      %p111 = scmp.eq.s32.totalorder %s21, 1
      %p112 = por %p110, %p111
      %p114 = scmp.ne.s32.totalorder %s99, %s113
      %p115 = scmp.eq.s32.totalorder %s21, 0
      %p116 = por %p114, %p115
      %s118 = sadd.s32 %s117, 1
      %p121 = scmp.eq.s32.totalorder %s15, 1
      %p122 = scmp.ne.s32.totalorder %s117, %s119
      %p123 = scmp.eq.s32.totalorder %s15, 0
      %p124 = por %p122, %p123
      %p125 = scmp.ne.s32.totalorder %s117, %s119
      %p126 = scmp.eq.s32.totalorder %s20, 1
      %p127 = por %p125, %p126
      %p128 = scmp.ne.s32.totalorder %s119, %s120
      %p129 = scmp.eq.s32.totalorder %s20, 0
      %p130 = por %p128, %p129
      %p131 = scmp.ne.s32.totalorder %s119, %s120
      %p132 = scmp.eq.s32.totalorder %s21, 1
      %p133 = por %p131, %p132
      %p135 = scmp.ne.s32.totalorder %s120, %s134
      %p136 = scmp.eq.s32.totalorder %s21, 0
      %p137 = por %p135, %p136
      %s139 = sadd.s32 %s138, 1
      %p142 = scmp.eq.s32.totalorder %s15, 1
      %p143 = scmp.ne.s32.totalorder %s138, %s140
      %p144 = scmp.eq.s32.totalorder %s15, 0
      %p145 = por %p143, %p144
      %p146 = scmp.ne.s32.totalorder %s138, %s140
      %p147 = scmp.eq.s32.totalorder %s20, 1
      %p148 = por %p146, %p147
      %p149 = scmp.ne.s32.totalorder %s140, %s141
      %p150 = scmp.eq.s32.totalorder %s20, 0
      %p151 = por %p149, %p150
      %p152 = scmp.ne.s32.totalorder %s140, %s141
      %p153 = scmp.eq.s32.totalorder %s21, 1
      %p154 = por %p152, %p153
      %p156 = scmp.ne.s32.totalorder %s141, %s155
      %p157 = scmp.eq.s32.totalorder %s21, 0
      %p158 = por %p156, %p157
      %s159 = ssub.s32 %s15, %s22
      %p160 = scmp.eq.s32.totalorder %s159, 0
      %s162 = sadd.s32 %s161, 1
      %s163 = scalar_select %p160, %s161, %s162
      %p166 = pneg %p160
      %p167 = scmp.eq.s32.totalorder %s15, 1
      %p168 = por %p166, %p167
      %p169 = scmp.ne.s32.totalorder %s161, %s164
      %p170 = scmp.eq.s32.totalorder %s15, 0
      %p171 = por %p169, %p170
      %p172 = scmp.ne.s32.totalorder %s161, %s164
      %p173 = scmp.eq.s32.totalorder %s20, 1
      %p174 = por %p172, %p173
      %p175 = scmp.ne.s32.totalorder %s164, %s165
      %p176 = scmp.eq.s32.totalorder %s20, 0
      %p177 = por %p175, %p176
      %p178 = scmp.ne.s32.totalorder %s164, %s165
      %p179 = scmp.eq.s32.totalorder %s21, 1
      %p180 = por %p178, %p179
      %p182 = scmp.ne.s32.totalorder %s165, %s181
      %p183 = scmp.eq.s32.totalorder %s21, 0
      %p184 = por %p182, %p183
      %p185 = scmp.le.s32.totalorder 1, %s15
      %p186 = scmp.lt.s32.totalorder %s15, 3
      %p187 = pnand %p185, %p186
      %p188 = pneg %p187
      // Predicated region
      $region9: #{tpu_custom_call.1} parent=5 // pred_check
        _
      $region10: #{tpu_custom_call.1} parent=5 // pred_check_branch
        %190 = sbr.rel (%p187) target = $region12
      $region11: #{tpu_custom_call.1} parent=5 // pred_region
        %s191 = ssub.s32 %s15, 1
        // Predicated region
        $region13: #{tpu_custom_call.1} parent=11 // pred_check
          %p192 = pneg %p88
        $region14: #{tpu_custom_call.1} parent=11 // pred_check_branch
          %194 = sbr.rel (%p192) target = $region16
        $region15: #{tpu_custom_call.1} parent=11 // pred_region
          _
        $region16: #{tpu_custom_call.1} parent=11 // pred_fallthru
          _
        // Predicated region
        $region17: #{tpu_custom_call.1} parent=11 // pred_check
          %p195 = pneg %p109
        $region18: #{tpu_custom_call.1} parent=11 // pred_check_branch
          %197 = sbr.rel (%p195) target = $region20
        $region19: #{tpu_custom_call.1} parent=11 // pred_region
          _
        $region20: #{tpu_custom_call.1} parent=11 // pred_fallthru
          _
        // Predicated region
        $region21: #{tpu_custom_call.1} parent=11 // pred_check
          %p198 = pneg %p130
        $region22: #{tpu_custom_call.1} parent=11 // pred_check_branch
          %200 = sbr.rel (%p198) target = $region24
        $region23: #{tpu_custom_call.1} parent=11 // pred_region
          _
        $region24: #{tpu_custom_call.1} parent=11 // pred_fallthru
          _
        // Predicated region
        $region25: #{tpu_custom_call.1} parent=11 // pred_check
          %p201 = pneg %p151
        $region26: #{tpu_custom_call.1} parent=11 // pred_check_branch
          %203 = sbr.rel (%p201) target = $region28
        $region27: #{tpu_custom_call.1} parent=11 // pred_region
          _
        $region28: #{tpu_custom_call.1} parent=11 // pred_fallthru
          _
      $region12: #{tpu_custom_call.1} parent=5 // pred_fallthru
        _
      %p204 = scmp.lt.s32.totalorder %s15, 2
      // Predicated region
      $region29: #{tpu_custom_call.1} parent=5 // pred_check
        %p205 = pneg %p204
      $region30: #{tpu_custom_call.1} parent=5 // pred_check_branch
        %207 = sbr.rel (%p205) target = $region32
      $region31: #{tpu_custom_call.1} parent=5 // pred_region
        // Predicated region
        $region33: #{tpu_custom_call.1} parent=31 // pred_check
          %p208 = pneg %p35
        $region34: #{tpu_custom_call.1} parent=31 // pred_check_branch
          %210 = sbr.rel (%p208) target = $region36
        $region35: #{tpu_custom_call.1} parent=31 // pred_region
          %p211 = scmp.lt.s32.totalorder %s15, 1
          %s212 = scalar_select %p211, %s15, 1
          %s213 = smul.addr %s212, 2
          %s214 = smul.addr %s213, 8
          %s215 = scalar_lea.vmem %s0, %s214
        $region36: #{tpu_custom_call.1} parent=31 // pred_fallthru
          _
        // Predicated region
        $region37: #{tpu_custom_call.1} parent=31 // pred_check
          %p216 = pneg %p61
        $region38: #{tpu_custom_call.1} parent=31 // pred_check_branch
          %218 = sbr.rel (%p216) target = $region40
        $region39: #{tpu_custom_call.1} parent=31 // pred_region
          %p219 = scmp.lt.s32.totalorder %s15, 1
          %s220 = scalar_select %p219, %s15, 1
          %s221 = smul.addr %s220, 2
          %s222 = smul.addr %s221, 4
          %s223 = scalar_lea.vmem %s1, %s222
        $region40: #{tpu_custom_call.1} parent=31 // pred_fallthru
          _
      $region32: #{tpu_custom_call.1} parent=5 // pred_fallthru
        _
      %p224 = scmp.le.s32.totalorder 1, %s15
      %p225 = scmp.lt.s32.totalorder %s15, 3
      %p226 = pnand %p224, %p225
      %p227 = pneg %p226
      // Predicated region
      $region41: #{tpu_custom_call.1} parent=5 // pred_check
        _
      $region42: #{tpu_custom_call.1} parent=5 // pred_check_branch
        %229 = sbr.rel (%p226) target = $region44
      $region43: #{tpu_custom_call.1} parent=5 // pred_region
        %s230 = ssub.s32 %s15, 1
        %p231 = scmp.lt.s32.totalorder %s20, 1
        %s232 = scalar_select %p231, %s20, 1
        %s233 = smul.addr %s232, 2
        %s234 = smul.addr %s233, 8
        %s235 = scalar_lea.vmem %s0, %s234
        %p236 = pneg %p41
        %p237 = pneg %p38
        %p238 = scmp.lt.s32.totalorder %s20, 1
        %s239 = scalar_select %p238, %s20, 1
        %s240 = smul.addr %s239, 2
        %s241 = smul.addr %s240, 4
        %s242 = scalar_lea.vmem %s1, %s241
        %p243 = pneg %p67
        %p244 = pneg %p64
        %p245 = pneg %p88
        %p246 = pneg %p85
        %p247 = pneg %p109
        %p248 = pneg %p106
        %p249 = pneg %p130
        %p250 = pneg %p127
        %p251 = pneg %p151
        %p252 = pneg %p148
        %p253 = pneg %p177
        %p254 = pneg %p174
        %s255 = sand.u32 %s164, 1
        %s256 = scalar_lea.sflag [#allocation3], %s255
        %s257 = sand.u32 %s164, 1
        %s258 = smul.addr %s257, 16
        %s259 = scalar_lea.vmem [#allocation2], %s258
        %p260 = scmp.lt.s32.totalorder %s20, 1
        %s261 = scalar_select %p260, %s20, 1
        %s262 = smul.addr %s261, 2
        %s263 = smul.addr %s262, 8
        %s264 = scalar_lea.vmem %s0, %s263
        %p265 = scmp.lt.s32.totalorder %s20, 1
        %s266 = scalar_select %p265, %s20, 1
        %s267 = smul.addr %s266, 2
        %s268 = smul.addr %s267, 4
        %s269 = scalar_lea.vmem %s1, %s268
        %v270 = vld [vmem:[%s2] sm:$0x3f]
        %272 = vset.pattern.permute.xlu0 0
        %273 = vperm.xlu0 %272, %v270
        %v274 = vpop.permute.xlu0 %273
        %276 = vset.pattern.permute.xlu0 1
        %277 = vperm.xlu0 %276, %v270
        %v278 = vpop.permute.xlu0 %277
        %v280 = vld [vmem:[%s3] sm:$0xf]
        %282 = vset.pattern.permute.xlu0 0
        %283 = vperm.xlu0 %282, %v280
        %v284 = vpop.permute.xlu0 %283
        %285 = vset.pattern.permute.xlu0 1
        %286 = vperm.xlu0 %285, %v280
        %v287 = vpop.permute.xlu0 %286
        %v288 = vld [vmem:[%s4] sm:$0xff]
        %v289 = vld [vmem:[%s5] sm:$0xff]
        %v290 = vld [vmem:[%s264] sm:$0x3f]
        %v291 = vld [vmem:[%s264 + $0x8] sm:$0x3f]
        %v292 = vmul.f32 %v290, %v274
        %v293 = vmul.f32 %v291, %v274
        %v294 = vadd.f32 %v292, %v278
        %v295 = vadd.f32 %v293, %v278
        %v296 = vmax.f32 %v294, 0.0
        %v297 = vmax.f32 %v295, 0.0
        %v298 = vld [vmem:[%s269] sm:$0xff]
        %v300 = vunpack.c.l.s4 839922192
        %v301 = vunpack.c.0.s8 %v300
        %v302 = vlaneseq
        %v303 = vshrl.u32 %v302, 7
        %v304 = vsub.s32 %v301, %v303
        %v305 = vrot.slane %v284, %v304
        %v307 = vmul.f32 %v298, %v305
        %v309 = vunpack.c.l.s4 839922192
        %v310 = vunpack.c.0.s8 %v309
        %v311 = vlaneseq
        %v312 = vshrl.u32 %v311, 7
        %v313 = vsub.s32 %v310, %v312
        %v314 = vrot.slane %v287, %v313
        %v316 = vadd.f32 %v307, %v314
        %v317 = vmax.f32 %v316, 0.0
        %v319 = vcombine.high %v317, %v317
        %vm320 = vcmask 31744
        %v322 = vsel %vm320, %v289, 0
        %vm324 = vcmask 1043456
        %v325 = vsel %vm324, %v317, 0
        %v327 = vsel %vm324, %v319, 0
        %329 = vmatprep.subr.mxu0 %v327
        %330 = vmatpush1.msra.mxu0 %v325
        %331 = vmatprep.subr.mxu0 0.0
        %332 = vmatpush1.msra.mxu0 0.0
        %333 = vmatprep.subr.mxu0 0.0
        %334 = vmatpush1.msra.mxu0 0.0
        %335 = vmatprep.subr.mxu0 0.0
        %336 = vmatpush1.msra.mxu0 0.0
        %337 = vmatprep.subr.mxu0 0.0
        %338 = vmatpush1.msra.mxu0 0.0
        %339 = vmatprep.subr.mxu0 0.0
        %340 = vmatpush1.msra.mxu0 0.0
        %341 = vmatprep.subr.mxu0 0.0
        %342 = vmatpush1.msra.mxu0 0.0
        %343 = vmatprep.subr.mxu0 0.0
        %344 = vmatpush1.msra.mxu0 0.0
        %345 = vmatprep.subr.mxu0 0.0
        %346 = vmatpush1.msra.mxu0 0.0
        %347 = vmatprep.subr.mxu0 0.0
        %348 = vmatpush1.msra.mxu0 0.0
        %349 = vmatprep.subr.mxu0 0.0
        %350 = vmatpush1.msra.mxu0 0.0
        %351 = vmatprep.subr.mxu0 0.0
        %352 = vmatpush1.msra.mxu0 0.0
        %353 = vmatprep.subr.mxu0 0.0
        %354 = vmatpush1.msra.mxu0 0.0
        %355 = vmatprep.subr.mxu0 0.0
        %356 = vmatpush1.msra.mxu0 0.0
        %357 = vmatprep.subr.mxu0 0.0
        %358 = vmatpush1.msra.mxu0 0.0
        %359 = vmatprep.subr.mxu0 0.0
        %360 = vmatpush1.msra.mxu0 0.0
        %361 = vmatprep.subr.mxu0 0.0
        %362 = vmatpush1.msra.mxu0 0.0
        %363 = vmatprep.subr.mxu0 0.0
        %364 = vmatpush1.msra.mxu0 0.0
        %365 = vmatprep.subr.mxu0 0.0
        %366 = vmatpush1.msra.mxu0 0.0
        %367 = vmatprep.subr.mxu0 0.0
        %368 = vmatpush1.msra.mxu0 0.0
        %369 = vmatprep.subr.mxu0 0.0
        %370 = vmatpush1.msra.mxu0 0.0
        %371 = vmatprep.subr.mxu0 0.0
        %372 = vmatpush1.msra.mxu0 0.0
        %373 = vmatprep.subr.mxu0 0.0
        %374 = vmatpush1.msra.mxu0 0.0
        %375 = vmatprep.subr.mxu0 0.0
        %376 = vmatpush1.msra.mxu0 0.0
        %377 = vmatprep.subr.mxu0 0.0
        %378 = vmatpush1.msra.mxu0 0.0
        %379 = vmatprep.subr.mxu0 0.0
        %380 = vmatpush1.msra.mxu0 0.0
        %381 = vmatprep.subr.mxu0 0.0
        %382 = vmatpush1.msra.mxu0 0.0
        %383 = vmatprep.subr.mxu0 0.0
        %384 = vmatpush1.msra.mxu0 0.0
        %385 = vmatprep.subr.mxu0 0.0
        %386 = vmatpush1.msra.mxu0 0.0
        %387 = vmatprep.subr.mxu0 0.0
        %388 = vmatpush1.msra.mxu0 0.0
        %389 = vmatprep.subr.mxu0 0.0
        %390 = vmatpush1.msra.mxu0 0.0
        %391 = vmatprep.subr.mxu0 0.0
        %392 = vmatpush1.msra.mxu0 0.0
        %393 = vmatprep.mubr.f32.mxu0 0.0
        %394 = vmatmul.mubr.f32.gmra.mrb[0].mxu0 %v322
        %v395 = vpop.f32.mrb[0].mxu0
        %v396 = vadd.f32 0.0, %v395
        %v397 = vpop.f32.mrb[0].mxu0
        %v398 = vadd.f32 0.0, %v397
        %399 = vdwg.mxu0
        %vm400 = vcmask 48128
        %v402 = vsel %vm400, %v288, 0
        %vm404 = vcmask 1045504
        %v406 = vsel %vm404, %v296, 0
        %v409 = vsel %vm404, %v297, 0
        %411 = vmatprep.subr.mxu0 %v409
        %412 = vmatpush1.msra.mxu0 %v406
        %413 = vmatprep.subr.mxu0 0.0
        %414 = vmatpush1.msra.mxu0 0.0
        %415 = vmatprep.subr.mxu0 0.0
        %416 = vmatpush1.msra.mxu0 0.0
        %417 = vmatprep.subr.mxu0 0.0
        %418 = vmatpush1.msra.mxu0 0.0
        %419 = vmatprep.subr.mxu0 0.0
        %420 = vmatpush1.msra.mxu0 0.0
        %421 = vmatprep.subr.mxu0 0.0
        %422 = vmatpush1.msra.mxu0 0.0
        %423 = vmatprep.subr.mxu0 0.0
        %424 = vmatpush1.msra.mxu0 0.0
        %425 = vmatprep.subr.mxu0 0.0
        %426 = vmatpush1.msra.mxu0 0.0
        %427 = vmatprep.subr.mxu0 0.0
        %428 = vmatpush1.msra.mxu0 0.0
        %429 = vmatprep.subr.mxu0 0.0
        %430 = vmatpush1.msra.mxu0 0.0
        %431 = vmatprep.subr.mxu0 0.0
        %432 = vmatpush1.msra.mxu0 0.0
        %433 = vmatprep.subr.mxu0 0.0
        %434 = vmatpush1.msra.mxu0 0.0
        %435 = vmatprep.subr.mxu0 0.0
        %436 = vmatpush1.msra.mxu0 0.0
        %437 = vmatprep.subr.mxu0 0.0
        %438 = vmatpush1.msra.mxu0 0.0
        %439 = vmatprep.subr.mxu0 0.0
        %440 = vmatpush1.msra.mxu0 0.0
        %441 = vmatprep.subr.mxu0 0.0
        %442 = vmatpush1.msra.mxu0 0.0
        %443 = vmatprep.subr.mxu0 0.0
        %444 = vmatpush1.msra.mxu0 0.0
        %445 = vmatprep.subr.mxu0 0.0
        %446 = vmatpush1.msra.mxu0 0.0
        %447 = vmatprep.subr.mxu0 0.0
        %448 = vmatpush1.msra.mxu0 0.0
        %449 = vmatprep.subr.mxu0 0.0
        %450 = vmatpush1.msra.mxu0 0.0
        %451 = vmatprep.subr.mxu0 0.0
        %452 = vmatpush1.msra.mxu0 0.0
        %453 = vmatprep.subr.mxu0 0.0
        %454 = vmatpush1.msra.mxu0 0.0
        %455 = vmatprep.subr.mxu0 0.0
        %456 = vmatpush1.msra.mxu0 0.0
        %457 = vmatprep.subr.mxu0 0.0
        %458 = vmatpush1.msra.mxu0 0.0
        %459 = vmatprep.subr.mxu0 0.0
        %460 = vmatpush1.msra.mxu0 0.0
        %461 = vmatprep.subr.mxu0 0.0
        %462 = vmatpush1.msra.mxu0 0.0
        %463 = vmatprep.subr.mxu0 0.0
        %464 = vmatpush1.msra.mxu0 0.0
        %465 = vmatprep.subr.mxu0 0.0
        %466 = vmatpush1.msra.mxu0 0.0
        %467 = vmatprep.subr.mxu0 0.0
        %468 = vmatpush1.msra.mxu0 0.0
        %469 = vmatprep.subr.mxu0 0.0
        %470 = vmatpush1.msra.mxu0 0.0
        %471 = vmatprep.subr.mxu0 0.0
        %472 = vmatpush1.msra.mxu0 0.0
        %473 = vmatprep.subr.mxu0 0.0
        %474 = vmatpush1.msra.mxu0 0.0
        %475 = vmatprep.mubr.f32.mxu0 0.0
        %476 = vmatmul.mubr.f32.gmra.mrb[0].mxu0 %v402
        %v477 = vpop.f32.mrb[0].mxu0
        %v478 = vadd.f32 %v396, %v477
        %v479 = vpop.f32.mrb[0].mxu0
        %v480 = vadd.f32 %v398, %v479
        %481 = vdwg.mxu0
        %482 = vst [vmem:[%s259] sm:$0xff] %v478
        %483 = vst [vmem:[%s259 + $0x8] sm:$0xff] %v480
        %s484 = sand.u32 %s164, 1
        %s485 = scalar_lea.sflag [#allocation3], %s484
        %s486 = sand.u32 %s164, 1
        %s487 = smul.addr %s486, 16
        %s488 = scalar_lea.vmem [#allocation2], %s487
        // Predicated region
        $region45: #{tpu_custom_call.1} parent=43 // pred_check
          %p489 = pneg %p174
        $region46: #{tpu_custom_call.1} parent=43 // pred_check_branch
          %491 = sbr.rel (%p489) target = $region48
        $region47: #{tpu_custom_call.1} parent=43 // pred_region
          %s493 = ssub.s32 256, 256
          %494 = vsyncadd %s485, %s493
          %s495 = smul.addr %s20, 2
          %s496 = smul.addr %s495, 128
          %s497 = scalar_lea.hbm %s6, %s496
          %s499 = sshll.u32 %s488, 4
          %s500 = int_to_ptr.vmem [resolvable:$true] %s499
          %502 = dma.vmem_to_hbm [thread:$0]  %s500, 256, %s497, %s485
        $region48: #{tpu_custom_call.1} parent=43 // pred_fallthru
          _
      $region44: #{tpu_custom_call.1} parent=5 // pred_fallthru
        _
      %p503 = scmp.le.s32.totalorder 2, %s15
      // Predicated region
      $region49: #{tpu_custom_call.1} parent=5 // pred_check
        %p504 = pneg %p503
      $region50: #{tpu_custom_call.1} parent=5 // pred_check_branch
        %506 = sbr.rel (%p504) target = $region52
      $region51: #{tpu_custom_call.1} parent=5 // pred_region
        %s507 = ssub.s32 %s15, 2
        // Predicated region
        $region53: #{tpu_custom_call.1} parent=51 // pred_check
          %p508 = pneg %p180
        $region54: #{tpu_custom_call.1} parent=51 // pred_check_branch
          %510 = sbr.rel (%p508) target = $region56
        $region55: #{tpu_custom_call.1} parent=51 // pred_region
          %s511 = sand.u32 %s165, 1
          %s512 = scalar_lea.sflag [#allocation3], %s511
          %s513 = sand.u32 %s165, 1
          %s514 = smul.addr %s513, 16
          %s515 = scalar_lea.vmem [#allocation2], %s514
          %516 = dma.done %s512, 256
        $region56: #{tpu_custom_call.1} parent=51 // pred_fallthru
          _
      $region52: #{tpu_custom_call.1} parent=5 // pred_fallthru
        _
    $region6: #{tpu_custom_call.1} parent=1 // loop_footer
      %s19 = sadd.s32 1, %s15
    $region7: #{tpu_custom_call.1} parent=1 // loop_footer_branch
      %14 = sbr.rel target = $region3
    $region8: #{tpu_custom_call.1} parent=1 // loop_exit
      _
    %517 = vsyncpa [#allocation3], 1
    %s518 = scalar_lea.sflag [#allocation3], 1
    %519 = vsyncpa %s518, 1

</llo_original>
